<compile_context>
chip_gen: v7x
topology: tpu7x:2x2x1
jax: 0.10.0
libtpu: 0.0.40
codegen_flags: <defaults>
</compile_context>

<pallas_src>
import jax
import jax.numpy as jnp
from jax.experimental import pallas as pl
from jax.experimental.pallas import tpu as pltpu

_LANE = 128


def _round_up(v, m):
    return (v + m - 1) // m * m


def _vmem_capacity_bytes():
    try:
        return int(pltpu.get_tpu_info().vmem_capacity_bytes)
    except Exception:
        return 64 << 20  # conservative: v7x per-TC physical VMEM


def _default_block_target():
    try:
        kind = jax.devices()[0].device_kind.lower()
    except Exception:
        return 512
    # v5e: tighter default scoped VMEM, single vector-store slot -> smaller M tile.
    if "v5 lite" in kind or "v5e" in kind or "v5lite" in kind:
        return 256
    return 512


def _preprocess_kernel(x_ref, w1_ref, b1_ref, w2_ref, b2_ref, out_ref):
    """Fused fc1 -> tanh -> fc2 on one [block_b, *] row tile."""
    x = x_ref[...]                                   # native dtype -> MXU
    h = jnp.dot(x, w1_ref[...], preferred_element_type=jnp.float32)
    h = h + b1_ref[...].astype(jnp.float32)          # f32 bias add (VPU)
    h = jnp.tanh(h)                                  # f32 tanh (EUP slot)
    h = h.astype(w2_ref.dtype)                       # back to MXU-native dtype
    y = jnp.dot(h, w2_ref[...], preferred_element_type=jnp.float32)
    y = y + b2_ref[...].astype(jnp.float32)
    out_ref[...] = y.astype(out_ref.dtype)


def prepare_params(params, dtype=None):
    """One-time (init-path) padding of the hidden dim to a lane multiple.

    params = ((W1 [in, hidden], b1 [hidden]), (W2 [hidden, out], b2 [out]))
    Zero padding of the hidden dim is exact: padded hidden units get zero
    weights & bias -> tanh(0) = 0 -> multiply zero rows of W2 -> contribute 0.
    Returns (w1_p, b1_p, w2_p, b2_p) ready to feed to preprocess_forward.
    """
    (w1, b1), (w2, b2) = params
    if dtype is None:
        dtype = w1.dtype
    in_size, hid = w1.shape
    out_size = w2.shape[1]
    hid_p = _round_up(hid, _LANE)

    w1_p = jnp.zeros((in_size, hid_p), dtype).at[:, :hid].set(w1.astype(dtype))
    b1_p = jnp.zeros((1, hid_p), dtype).at[0, :hid].set(b1.astype(dtype))
    w2_p = jnp.zeros((hid_p, out_size), dtype).at[:hid, :].set(w2.astype(dtype))
    b2_p = jnp.reshape(b2.astype(dtype), (1, out_size))
    return (w1_p, b1_p, w2_p, b2_p)


def preprocess_forward(x, prepared_params, *, block_b=None):
    """PreProcess.forward: tanh(x @ W1 + b1) @ W2 + b2.

    x: [B, input_size]; prepared_params from prepare_params() (hidden dim
    already lane-padded; weights stored [in_features, out_features]).
    """
    w1_p, b1_p, w2_p, b2_p = prepared_params
    B, in_size = x.shape
    hid_p = w1_p.shape[1]
    out_size = w2_p.shape[1]
    dtype = x.dtype
    itemsize = jnp.dtype(dtype).itemsize
    sublane = 16 if dtype == jnp.bfloat16 else 8

    # ---- batch tiling: >=2 grid steps (v7x dual TC), minimal padding waste ----
    target = _default_block_target() if block_b is None else int(block_b)
    target = max(target, sublane)
    n_steps = max(2, pl.cdiv(B, target))
    block_b = _round_up(pl.cdiv(B, n_steps), sublane)
    b_pad = _round_up(B, block_b)
    if b_pad != B:
        # Only the batch remainder is padded (<= n_steps*sublane rows of waste).
        x_p = jnp.zeros((b_pad, in_size), dtype).at[:B, :].set(x)
    else:
        x_p = x
    grid = (b_pad // block_b,)

    # Advisory cost hint for XLA scheduling around the custom call.
    flops = 2 * b_pad * (in_size * hid_p + hid_p * out_size)
    bytes_accessed = (x_p.size + w1_p.size + b1_p.size + w2_p.size
                      + b2_p.size + b_pad * out_size) * itemsize
    cost = pl.CostEstimate(flops=flops,
                           transcendentals=b_pad * hid_p,
                           bytes_accessed=bytes_accessed)

    def _build_specs(single_buffer_weights):
        # Constant index_maps -> weights fetched once and stay resident;
        # Buffered(1) drops the useless second buffer (halves weight VMEM).
        wkw = {"pipeline_mode": pl.Buffered(1)} if single_buffer_weights else {}
        in_specs = [
            pl.BlockSpec((block_b, in_size), lambda i: (i, 0)),
            pl.BlockSpec((in_size, hid_p), lambda i: (0, 0), **wkw),
            pl.BlockSpec((1, hid_p), lambda i: (0, 0), **wkw),
            pl.BlockSpec((hid_p, out_size), lambda i: (0, 0), **wkw),
            pl.BlockSpec((1, out_size), lambda i: (0, 0), **wkw),
        ]
        # Output last dim == full array dim (no host-side feature pad/slice).
        out_spec = pl.BlockSpec((block_b, out_size), lambda i: (i, 0))
        return in_specs, out_spec

    def _run(single_buffer_weights):
        in_specs, out_spec = _build_specs(single_buffer_weights)
        weight_bufs = 1 if single_buffer_weights else 2
        weight_bytes = (w1_p.size + b1_p.size + w2_p.size + b2_p.size) \
            * itemsize * weight_bufs
        io_bytes = 2 * block_b * (in_size + out_size) * itemsize   # dbl-buffered x/out tiles
        h_bytes = 2 * block_b * hid_p * 4                          # f32 intermediates
        needed = weight_bytes + io_bytes + h_bytes
        vmem_limit = int(min(_vmem_capacity_bytes(),
                             max(2 * needed + (4 << 20), 32 << 20)))
        return pl.pallas_call(
            _preprocess_kernel,
            out_shape=jax.ShapeDtypeStruct((b_pad, out_size), dtype),
            grid_spec=pltpu.PrefetchScalarGridSpec(
                num_scalar_prefetch=0,
                grid=grid,
                in_specs=in_specs,
                out_specs=out_spec,
            ),
            compiler_params=pltpu.CompilerParams(
                dimension_semantics=("parallel",),
                vmem_limit_bytes=vmem_limit),
            cost_estimate=cost,
        )(x_p, w1_p, b1_p, w2_p, b2_p)

    try:
        out_padded = _run(True)
    except Exception:
        # Fallback if this jax/libtpu build rejects single-buffered specs.
        out_padded = _run(False)

    return out_padded if b_pad == B else out_padded[:B]


def init_preprocess_params(key, input_size, processed_x_size,
                           dtype=jnp.float32):
    """Mirror nn.Linear default init: U(-1/sqrt(fan_in), 1/sqrt(fan_in))."""
    dims = [(input_size, processed_x_size),
            (processed_x_size, processed_x_size)]
    params = []
    for fan_in, fan_out in dims:
        key, kw, kb = jax.random.split(key, 3)
        bound = 1.0 / (fan_in ** 0.5)
        w = jax.random.uniform(kw, (fan_in, fan_out), dtype, -bound, bound)
        b = jax.random.uniform(kb, (fan_out,), dtype, -bound, bound)
        params.append((w, b))
    return tuple(params)


def preprocess_reference(x, params):
    (w1, b1), (w2, b2) = params
    return jnp.tanh(x @ w1 + b1) @ w2 + b2


if __name__ == "__main__":
    input_size, processed_x_size = 16, 32
    batch = 50  # deliberately not a multiple of the sublane/block size

    key = jax.random.PRNGKey(0)
    kx, kp = jax.random.split(key)
    x = jax.random.normal(kx, (batch, input_size), jnp.float32)
    params = init_preprocess_params(kp, input_size, processed_x_size)

    # One-time padding of the weights (hoisted out of the forward path).
    prepared = prepare_params(params)

    # Default tiling: 2-step parallel grid, batch padded 50 -> 64.
    out_default = jax.block_until_ready(preprocess_forward(x, prepared))
    # Small explicit block: 4-step parallel grid.
    out_tiled = jax.block_until_ready(
        preprocess_forward(x, prepared, block_b=16))

    ref = preprocess_reference(x, params)
    assert out_default.shape == (batch, processed_x_size)
    assert out_tiled.shape == (batch, processed_x_size)
    assert jnp.allclose(out_default, ref, atol=1e-5, rtol=1e-5), "default mismatch"
    assert jnp.allclose(out_tiled, ref, atol=1e-5, rtol=1e-5), "tiled mismatch"

    print("KERNEL_OK")
</pallas_src>

<mosaic_0001>
module attributes {stable_mosaic.version = 11 : i64} {
  func.func @_preprocess_kernel(%arg0: i32, %arg1: memref<32x16xf32, #tpu.memory_space<vmem>>, %arg2: memref<16x128xf32, #tpu.memory_space<vmem>>, %arg3: memref<1x128xf32, #tpu.memory_space<vmem>>, %arg4: memref<128x32xf32, #tpu.memory_space<vmem>>, %arg5: memref<1x32xf32, #tpu.memory_space<vmem>>, %arg6: memref<32x32xf32, #tpu.memory_space<vmem>>) attributes {dimension_semantics = [#tpu.dimension_semantics<parallel>], iteration_bounds = array<i64: 2>, scalar_prefetch = 0 : i64, scratch_operands = 0 : i64, tpu.core_type = #tpu.core_type<tc>, window_params = [{transform_indices = @transform_0, window_bounds = array<i64: 32, 16>}, {pipeline_mode = #tpu.pipeline_mode<synchronous>, transform_indices = @transform_1, window_bounds = array<i64: 16, 128>}, {pipeline_mode = #tpu.pipeline_mode<synchronous>, transform_indices = @transform_2, window_bounds = array<i64: 1, 128>}, {pipeline_mode = #tpu.pipeline_mode<synchronous>, transform_indices = @transform_3, window_bounds = array<i64: 128, 32>}, {pipeline_mode = #tpu.pipeline_mode<synchronous>, transform_indices = @transform_4, window_bounds = array<i64: 1, 32>}, {transform_indices = @transform_5, window_bounds = array<i64: 32, 32>}]} {
    %c0 = arith.constant 0 : index
    %c0_0 = arith.constant 0 : index
    %0 = vector.load %arg1[%c0, %c0_0] : memref<32x16xf32, #tpu.memory_space<vmem>>, vector<32x16xf32>
    %c0_1 = arith.constant 0 : index
    %c0_2 = arith.constant 0 : index
    %1 = vector.load %arg2[%c0_1, %c0_2] : memref<16x128xf32, #tpu.memory_space<vmem>>, vector<16x128xf32>
    %cst = arith.constant dense<0.000000e+00> : vector<32x128xf32>
    %2 = tpu.matmul %0, %1, %cst {dimension_numbers = #tpu.dot_dimension_numbers<[1], [0], [0], [1], [0, 0, 1, 1], [], []>} : vector<32x16xf32>, vector<16x128xf32>, vector<32x128xf32> -> vector<32x128xf32>
    %c0_3 = arith.constant 0 : index
    %c0_4 = arith.constant 0 : index
    %3 = vector.load %arg3[%c0_3, %c0_4] : memref<1x128xf32, #tpu.memory_space<vmem>>, vector<1x128xf32>
    %4 = vector.broadcast %3 : vector<1x128xf32> to vector<32x128xf32>
    %5 = arith.addf %2, %4 : vector<32x128xf32>
    %6 = math.tanh %5 : vector<32x128xf32>
    %c0_5 = arith.constant 0 : index
    %c0_6 = arith.constant 0 : index
    %7 = vector.load %arg4[%c0_5, %c0_6] : memref<128x32xf32, #tpu.memory_space<vmem>>, vector<128x32xf32>
    %cst_7 = arith.constant dense<0.000000e+00> : vector<32x32xf32>
    %8 = tpu.matmul %6, %7, %cst_7 {dimension_numbers = #tpu.dot_dimension_numbers<[1], [0], [0], [1], [0, 0, 1, 1], [], []>} : vector<32x128xf32>, vector<128x32xf32>, vector<32x32xf32> -> vector<32x32xf32>
    %c0_8 = arith.constant 0 : index
    %c0_9 = arith.constant 0 : index
    %9 = vector.load %arg5[%c0_8, %c0_9] : memref<1x32xf32, #tpu.memory_space<vmem>>, vector<1x32xf32>
    %10 = vector.broadcast %9 : vector<1x32xf32> to vector<32x32xf32>
    %11 = arith.addf %8, %10 : vector<32x32xf32>
    %c0_10 = arith.constant 0 : index
    %c0_11 = arith.constant 0 : index
    %12 = vector.load %arg6[%c0_10, %c0_11] : memref<32x32xf32, #tpu.memory_space<vmem>>, vector<32x32xf32>
    tpu.vector_store %arg6[%c0_10, %c0_11], %11 {strides = array<i32>} : memref<32x32xf32, #tpu.memory_space<vmem>>, vector<32x32xf32>,
    return
  }
  func.func @transform_0(%arg0: i32) -> (i32, i32) {
    %c0_i32 = arith.constant 0 : i32
    %c0_i32_0 = arith.constant 0 : i32
    return %arg0, %c0_i32 : i32, i32
  }
  func.func @transform_1(%arg0: i32) -> (i32, i32) {
    %c0_i32 = arith.constant 0 : i32
    %c0_i32_0 = arith.constant 0 : i32
    %c0_i32_1 = arith.constant 0 : i32
    return %c0_i32, %c0_i32_0 : i32, i32
  }
  func.func @transform_2(%arg0: i32) -> (i32, i32) {
    %c0_i32 = arith.constant 0 : i32
    %c0_i32_0 = arith.constant 0 : i32
    %c0_i32_1 = arith.constant 0 : i32
    return %c0_i32, %c0_i32_0 : i32, i32
  }
  func.func @transform_3(%arg0: i32) -> (i32, i32) {
    %c0_i32 = arith.constant 0 : i32
    %c0_i32_0 = arith.constant 0 : i32
    %c0_i32_1 = arith.constant 0 : i32
    return %c0_i32, %c0_i32_0 : i32, i32
  }
  func.func @transform_4(%arg0: i32) -> (i32, i32) {
    %c0_i32 = arith.constant 0 : i32
    %c0_i32_0 = arith.constant 0 : i32
    %c0_i32_1 = arith.constant 0 : i32
    return %c0_i32, %c0_i32_0 : i32, i32
  }
  func.func @transform_5(%arg0: i32) -> (i32, i32) {
    %c0_i32 = arith.constant 0 : i32
    %c0_i32_0 = arith.constant 0 : i32
    return %arg0, %c0_i32 : i32, i32
  }
}

module attributes {stable_mosaic.version = 11 : i64} {
  func.func @_preprocess_kernel(%arg0: i32, %arg1: memref<32x16xf32, #tpu.memory_space<vmem>>, %arg2: memref<16x128xf32, #tpu.memory_space<vmem>>, %arg3: memref<1x128xf32, #tpu.memory_space<vmem>>, %arg4: memref<128x32xf32, #tpu.memory_space<vmem>>, %arg5: memref<1x32xf32, #tpu.memory_space<vmem>>, %arg6: memref<32x32xf32, #tpu.memory_space<vmem>>) attributes {dimension_semantics = [#tpu.dimension_semantics<parallel>], iteration_bounds = array<i64: 2>, scalar_prefetch = 0 : i64, scratch_operands = 0 : i64, tpu.core_type = #tpu.core_type<tc>, window_params = [{transform_indices = @transform_0, window_bounds = array<i64: 32, 16>}, {pipeline_mode = #tpu.pipeline_mode<synchronous>, transform_indices = @transform_1, window_bounds = array<i64: 16, 128>}, {pipeline_mode = #tpu.pipeline_mode<synchronous>, transform_indices = @transform_2, window_bounds = array<i64: 1, 128>}, {pipeline_mode = #tpu.pipeline_mode<synchronous>, transform_indices = @transform_3, window_bounds = array<i64: 128, 32>}, {pipeline_mode = #tpu.pipeline_mode<synchronous>, transform_indices = @transform_4, window_bounds = array<i64: 1, 32>}, {transform_indices = @transform_5, window_bounds = array<i64: 32, 32>}]} {
    %c0 = arith.constant 0 : index
    %c0_0 = arith.constant 0 : index
    %0 = vector.load %arg1[%c0, %c0_0] : memref<32x16xf32, #tpu.memory_space<vmem>>, vector<32x16xf32>
    %c0_1 = arith.constant 0 : index
    %c0_2 = arith.constant 0 : index
    %1 = vector.load %arg2[%c0_1, %c0_2] : memref<16x128xf32, #tpu.memory_space<vmem>>, vector<16x128xf32>
    %cst = arith.constant dense<0.000000e+00> : vector<32x128xf32>
    %2 = tpu.matmul %0, %1, %cst {dimension_numbers = #tpu.dot_dimension_numbers<[1], [0], [0], [1], [0, 0, 1, 1], [], []>} : vector<32x16xf32>, vector<16x128xf32>, vector<32x128xf32> -> vector<32x128xf32>
    %c0_3 = arith.constant 0 : index
    %c0_4 = arith.constant 0 : index
    %3 = vector.load %arg3[%c0_3, %c0_4] : memref<1x128xf32, #tpu.memory_space<vmem>>, vector<1x128xf32>
    %4 = vector.broadcast %3 : vector<1x128xf32> to vector<32x128xf32>
    %5 = arith.addf %2, %4 : vector<32x128xf32>
    %6 = math.tanh %5 : vector<32x128xf32>
    %c0_5 = arith.constant 0 : index
    %c0_6 = arith.constant 0 : index
    %7 = vector.load %arg4[%c0_5, %c0_6] : memref<128x32xf32, #tpu.memory_space<vmem>>, vector<128x32xf32>
    %cst_7 = arith.constant dense<0.000000e+00> : vector<32x32xf32>
    %8 = tpu.matmul %6, %7, %cst_7 {dimension_numbers = #tpu.dot_dimension_numbers<[1], [0], [0], [1], [0, 0, 1, 1], [], []>} : vector<32x128xf32>, vector<128x32xf32>, vector<32x32xf32> -> vector<32x32xf32>
    %c0_8 = arith.constant 0 : index
    %c0_9 = arith.constant 0 : index
    %9 = vector.load %arg5[%c0_8, %c0_9] : memref<1x32xf32, #tpu.memory_space<vmem>>, vector<1x32xf32>
    %10 = vector.broadcast %9 : vector<1x32xf32> to vector<32x32xf32>
    %11 = arith.addf %8, %10 : vector<32x32xf32>
    %c0_10 = arith.constant 0 : index
    %c0_11 = arith.constant 0 : index
    %12 = vector.load %arg6[%c0_10, %c0_11] : memref<32x32xf32, #tpu.memory_space<vmem>>, vector<32x32xf32>
    tpu.vector_store %arg6[%c0_10, %c0_11], %11 {strides = array<i32>} : memref<32x32xf32, #tpu.memory_space<vmem>>, vector<32x32xf32>,
    return
  }
  func.func @transform_0(%arg0: i32) -> (i32, i32) {
    %c0_i32 = arith.constant 0 : i32
    %c0_i32_0 = arith.constant 0 : i32
    return %arg0, %c0_i32 : i32, i32
  }
  func.func @transform_1(%arg0: i32) -> (i32, i32) {
    %c0_i32 = arith.constant 0 : i32
    %c0_i32_0 = arith.constant 0 : i32
    %c0_i32_1 = arith.constant 0 : i32
    return %c0_i32, %c0_i32_0 : i32, i32
  }
  func.func @transform_2(%arg0: i32) -> (i32, i32) {
    %c0_i32 = arith.constant 0 : i32
    %c0_i32_0 = arith.constant 0 : i32
    %c0_i32_1 = arith.constant 0 : i32
    return %c0_i32, %c0_i32_0 : i32, i32
  }
  func.func @transform_3(%arg0: i32) -> (i32, i32) {
    %c0_i32 = arith.constant 0 : i32
    %c0_i32_0 = arith.constant 0 : i32
    %c0_i32_1 = arith.constant 0 : i32
    return %c0_i32, %c0_i32_0 : i32, i32
  }
  func.func @transform_4(%arg0: i32) -> (i32, i32) {
    %c0_i32 = arith.constant 0 : i32
    %c0_i32_0 = arith.constant 0 : i32
    %c0_i32_1 = arith.constant 0 : i32
    return %c0_i32, %c0_i32_0 : i32, i32
  }
  func.func @transform_5(%arg0: i32) -> (i32, i32) {
    %c0_i32 = arith.constant 0 : i32
    %c0_i32_0 = arith.constant 0 : i32
    return %arg0, %c0_i32 : i32, i32
  }
}

</mosaic_0001>

<llo_original>
// kernel: tpu_custom_call.1
$region0: #{tpu_custom_call.1}
  #allocation0 [shape = 'u32[]', space=smem, size = 0x4, offset = 0x4, fixed_abs, tag = 'smem constant byte address 0x4 - core index']
  #allocation1 [shape = 'u32[144,128]{1,0:T(1,128)}', space=vmem, size = 0x12000, scoped, tag = 'internal scratch']
  %s0 = inlined_call_operand.vmem [shape: f32[64,16], index: 0, kind: input, shape index: {}]
  %s1 = inlined_call_operand.vmem [shape: f32[16,128], index: 1, kind: input, shape index: {}]
  %s2 = inlined_call_operand.vmem [shape: f32[1,128], index: 2, kind: input, shape index: {}]
  %s3 = inlined_call_operand.vmem [shape: f32[128,32], index: 3, kind: input, shape index: {}]
  %s4 = inlined_call_operand.vmem [shape: f32[1,32], index: 4, kind: input, shape index: {}]
  %s5 = inlined_call_operand.vmem [shape: f32[64,32], index: 5, kind: output, shape index: {}]
  %s6 = sld [smem:[#allocation0]]
  $region53: #{tpu_custom_call.1} parent=0
    _
  %s8 = ssub.s32 1, %s6
  %s9 = scalar_select 0, %s8, %s6
  loop: start=0, step=1, limit=4
  $region2: #{tpu_custom_call.1} parent=0 // loop_pre_header
    _
  $region3: #{tpu_custom_call.1} parent=0 // loop_header
    %s11 = sphi 0, %s15
    %p12 = scmp.ge.s32.totalorder %s11, 4
    %s21 = sphi 0, %s23
    %s24 = sphi 0, %s21
    %s25 = sphi 0, %s24
    %s41 = sphi 0, %s25
    %s45 = sphi 0, %s45
    %s47 = sphi 0, %s45
    %s48 = sphi 0, %s47
    %s62 = sphi 0, %s48
    %s66 = sphi 0, %s66
    %s68 = sphi 0, %s66
    %s69 = sphi 0, %s68
    %s83 = sphi 0, %s69
    %s87 = sphi 0, %s87
    %s89 = sphi 0, %s87
    %s90 = sphi 0, %s89
    %s104 = sphi 0, %s90
    %s108 = sphi 0, %s108
    %s110 = sphi 0, %s108
    %s111 = sphi 0, %s110
    %s125 = sphi 0, %s111
    %s131 = sphi 0, %s133
    %s134 = sphi 0, %s131
    %s135 = sphi 0, %s134
    %s151 = sphi 0, %s135
  $region4: #{tpu_custom_call.1} parent=0 // loop_header_branch
    %14 = sbr.rel (%p12) target = $region8
  $region5: #{tpu_custom_call.1} parent=0 // loop_body
    %s16 = ssub.s32 %s11, 1
    %s17 = ssub.s32 %s11, 2
    %s18 = sadd.s32 %s11, 1
    %s19 = ssub.s32 %s11, %s18
    %p20 = scmp.eq.s32.totalorder %s19, 0
    %s22 = sadd.s32 %s21, 1
    %s23 = scalar_select %p20, %s21, %s22
    %p26 = pneg %p20
    %p27 = scmp.eq.s32.totalorder %s11, 1
    %p28 = por %p26, %p27
    %p29 = scmp.ne.s32.totalorder %s21, %s24
    %p30 = scmp.eq.s32.totalorder %s11, 0
    %p31 = por %p29, %p30
    %p32 = scmp.ne.s32.totalorder %s21, %s24
    %p33 = scmp.eq.s32.totalorder %s16, 1
    %p34 = por %p32, %p33
    %p35 = scmp.ne.s32.totalorder %s24, %s25
    %p36 = scmp.eq.s32.totalorder %s16, 0
    %p37 = por %p35, %p36
    %p38 = scmp.ne.s32.totalorder %s24, %s25
    %p39 = scmp.eq.s32.totalorder %s17, 1
    %p40 = por %p38, %p39
    %p42 = scmp.ne.s32.totalorder %s25, %s41
    %p43 = scmp.eq.s32.totalorder %s17, 0
    %p44 = por %p42, %p43
    %s46 = sadd.s32 %s45, 1
    %p49 = scmp.eq.s32.totalorder %s11, 1
    %p50 = scmp.ne.s32.totalorder %s45, %s47
    %p51 = scmp.eq.s32.totalorder %s11, 0
    %p52 = por %p50, %p51
    %p53 = scmp.ne.s32.totalorder %s45, %s47
    %p54 = scmp.eq.s32.totalorder %s16, 1
    %p55 = por %p53, %p54
    %p56 = scmp.ne.s32.totalorder %s47, %s48
    %p57 = scmp.eq.s32.totalorder %s16, 0
    %p58 = por %p56, %p57
    %p59 = scmp.ne.s32.totalorder %s47, %s48
    %p60 = scmp.eq.s32.totalorder %s17, 1
    %p61 = por %p59, %p60
    %p63 = scmp.ne.s32.totalorder %s48, %s62
    %p64 = scmp.eq.s32.totalorder %s17, 0
    %p65 = por %p63, %p64
    %s67 = sadd.s32 %s66, 1
    %p70 = scmp.eq.s32.totalorder %s11, 1
    %p71 = scmp.ne.s32.totalorder %s66, %s68
    %p72 = scmp.eq.s32.totalorder %s11, 0
    %p73 = por %p71, %p72
    %p74 = scmp.ne.s32.totalorder %s66, %s68
    %p75 = scmp.eq.s32.totalorder %s16, 1
    %p76 = por %p74, %p75
    %p77 = scmp.ne.s32.totalorder %s68, %s69
    %p78 = scmp.eq.s32.totalorder %s16, 0
    %p79 = por %p77, %p78
    %p80 = scmp.ne.s32.totalorder %s68, %s69
    %p81 = scmp.eq.s32.totalorder %s17, 1
    %p82 = por %p80, %p81
    %p84 = scmp.ne.s32.totalorder %s69, %s83
    %p85 = scmp.eq.s32.totalorder %s17, 0
    %p86 = por %p84, %p85
    %s88 = sadd.s32 %s87, 1
    %p91 = scmp.eq.s32.totalorder %s11, 1
    %p92 = scmp.ne.s32.totalorder %s87, %s89
    %p93 = scmp.eq.s32.totalorder %s11, 0
    %p94 = por %p92, %p93
    %p95 = scmp.ne.s32.totalorder %s87, %s89
    %p96 = scmp.eq.s32.totalorder %s16, 1
    %p97 = por %p95, %p96
    %p98 = scmp.ne.s32.totalorder %s89, %s90
    %p99 = scmp.eq.s32.totalorder %s16, 0
    %p100 = por %p98, %p99
    %p101 = scmp.ne.s32.totalorder %s89, %s90
    %p102 = scmp.eq.s32.totalorder %s17, 1
    %p103 = por %p101, %p102
    %p105 = scmp.ne.s32.totalorder %s90, %s104
    %p106 = scmp.eq.s32.totalorder %s17, 0
    %p107 = por %p105, %p106
    %s109 = sadd.s32 %s108, 1
    %p112 = scmp.eq.s32.totalorder %s11, 1
    %p113 = scmp.ne.s32.totalorder %s108, %s110
    %p114 = scmp.eq.s32.totalorder %s11, 0
    %p115 = por %p113, %p114
    %p116 = scmp.ne.s32.totalorder %s108, %s110
    %p117 = scmp.eq.s32.totalorder %s16, 1
    %p118 = por %p116, %p117
    %p119 = scmp.ne.s32.totalorder %s110, %s111
    %p120 = scmp.eq.s32.totalorder %s16, 0
    %p121 = por %p119, %p120
    %p122 = scmp.ne.s32.totalorder %s110, %s111
    %p123 = scmp.eq.s32.totalorder %s17, 1
    %p124 = por %p122, %p123
    %p126 = scmp.ne.s32.totalorder %s111, %s125
    %p127 = scmp.eq.s32.totalorder %s17, 0
    %p128 = por %p126, %p127
    %s129 = ssub.s32 %s11, %s18
    %p130 = scmp.eq.s32.totalorder %s129, 0
    %s132 = sadd.s32 %s131, 1
    %s133 = scalar_select %p130, %s131, %s132
    %p136 = pneg %p130
    %p137 = scmp.eq.s32.totalorder %s11, 1
    %p138 = por %p136, %p137
    %p139 = scmp.ne.s32.totalorder %s131, %s134
    %p140 = scmp.eq.s32.totalorder %s11, 0
    %p141 = por %p139, %p140
    %p142 = scmp.ne.s32.totalorder %s131, %s134
    %p143 = scmp.eq.s32.totalorder %s16, 1
    %p144 = por %p142, %p143
    %p145 = scmp.ne.s32.totalorder %s134, %s135
    %p146 = scmp.eq.s32.totalorder %s16, 0
    %p147 = por %p145, %p146
    %p148 = scmp.ne.s32.totalorder %s134, %s135
    %p149 = scmp.eq.s32.totalorder %s17, 1
    %p150 = por %p148, %p149
    %p152 = scmp.ne.s32.totalorder %s135, %s151
    %p153 = scmp.eq.s32.totalorder %s17, 0
    %p154 = por %p152, %p153
    %p155 = scmp.le.s32.totalorder 1, %s11
    %p156 = scmp.lt.s32.totalorder %s11, 3
    %p157 = pnand %p155, %p156
    %p158 = pneg %p157
    // Predicated region
    $region9: #{tpu_custom_call.1} parent=5 // pred_check
      _
    $region10: #{tpu_custom_call.1} parent=5 // pred_check_branch
      %160 = sbr.rel (%p157) target = $region12
    $region11: #{tpu_custom_call.1} parent=5 // pred_region
      %s161 = ssub.s32 %s11, 1
      // Predicated region
      $region13: #{tpu_custom_call.1} parent=11 // pred_check
        %p162 = pneg %p58
      $region14: #{tpu_custom_call.1} parent=11 // pred_check_branch
        %164 = sbr.rel (%p162) target = $region16
      $region15: #{tpu_custom_call.1} parent=11 // pred_region
        _
      $region16: #{tpu_custom_call.1} parent=11 // pred_fallthru
        _
      // Predicated region
      $region17: #{tpu_custom_call.1} parent=11 // pred_check
        %p165 = pneg %p79
      $region18: #{tpu_custom_call.1} parent=11 // pred_check_branch
        %167 = sbr.rel (%p165) target = $region20
      $region19: #{tpu_custom_call.1} parent=11 // pred_region
        _
      $region20: #{tpu_custom_call.1} parent=11 // pred_fallthru
        _
      // Predicated region
      $region21: #{tpu_custom_call.1} parent=11 // pred_check
        %p168 = pneg %p100
      $region22: #{tpu_custom_call.1} parent=11 // pred_check_branch
        %170 = sbr.rel (%p168) target = $region24
      $region23: #{tpu_custom_call.1} parent=11 // pred_region
        _
      $region24: #{tpu_custom_call.1} parent=11 // pred_fallthru
        _
      // Predicated region
      $region25: #{tpu_custom_call.1} parent=11 // pred_check
        %p171 = pneg %p121
      $region26: #{tpu_custom_call.1} parent=11 // pred_check_branch
        %173 = sbr.rel (%p171) target = $region28
      $region27: #{tpu_custom_call.1} parent=11 // pred_region
        _
      $region28: #{tpu_custom_call.1} parent=11 // pred_fallthru
        _
    $region12: #{tpu_custom_call.1} parent=5 // pred_fallthru
      _
    %p174 = scmp.lt.s32.totalorder %s11, 2
    // Predicated region
    $region29: #{tpu_custom_call.1} parent=5 // pred_check
      %p175 = pneg %p174
    $region30: #{tpu_custom_call.1} parent=5 // pred_check_branch
      %177 = sbr.rel (%p175) target = $region32
    $region31: #{tpu_custom_call.1} parent=5 // pred_region
      // Predicated region
      $region33: #{tpu_custom_call.1} parent=31 // pred_check
        %p178 = pneg %p31
      $region34: #{tpu_custom_call.1} parent=31 // pred_check_branch
        %180 = sbr.rel (%p178) target = $region36
      $region35: #{tpu_custom_call.1} parent=31 // pred_region
        %s181 = smul.u32 4, %s11
        %p182 = scmp.lt.s32.totalorder %s181, 7
        %s183 = scalar_select %p182, %s181, 7
        %s184 = smul.addr %s183, 8
        %s185 = scalar_lea.vmem %s0, %s184
        %s186 = smul.u32 4, %s11
      $region36: #{tpu_custom_call.1} parent=31 // pred_fallthru
        _
    $region32: #{tpu_custom_call.1} parent=5 // pred_fallthru
      _
    %p187 = scmp.le.s32.totalorder 1, %s11
    %p188 = scmp.lt.s32.totalorder %s11, 3
    %p189 = pnand %p187, %p188
    %p190 = pneg %p189
    // Predicated region
    $region37: #{tpu_custom_call.1} parent=5 // pred_check
      _
    $region38: #{tpu_custom_call.1} parent=5 // pred_check_branch
      %192 = sbr.rel (%p189) target = $region40
    $region39: #{tpu_custom_call.1} parent=5 // pred_region
      %s193 = ssub.s32 %s11, 1
      %s194 = smul.u32 4, %s16
      %p195 = scmp.lt.s32.totalorder %s194, 7
      %s196 = scalar_select %p195, %s194, 7
      %s197 = smul.addr %s196, 8
      %s198 = scalar_lea.vmem %s0, %s197
      %p199 = pneg %p37
      %p200 = pneg %p34
      %p201 = pneg %p58
      %p202 = pneg %p55
      %p203 = pneg %p79
      %p204 = pneg %p76
      %p205 = pneg %p100
      %p206 = pneg %p97
      %p207 = pneg %p121
      %p208 = pneg %p118
      %p209 = pneg %p147
      %p210 = pneg %p144
      %s211 = smul.u32 4, %s16
      %p212 = scmp.lt.s32.totalorder %s211, 7
      %s213 = scalar_select %p212, %s211, 7
      %s214 = smul.addr %s213, 8
      %s215 = scalar_lea.vmem %s5, %s214
      %s216 = smul.u32 4, %s16
      %p217 = scmp.lt.s32.totalorder %s216, 7
      %s218 = scalar_select %p217, %s216, 7
      %s219 = smul.addr %s218, 8
      %s220 = scalar_lea.vmem %s0, %s219
      %s221 = smul.u32 4, %s16
      %s222 = smul.u32 4, %s16
      %p223 = scmp.lt.s32.totalorder %s222, 7
      %s224 = scalar_select %p223, %s222, 7
      %s225 = smul.addr %s224, 8
      %s226 = scalar_lea.vmem %s5, %s225
      %s227 = smul.u32 4, %s16
      %v228 = vld [vmem:[%s220] sm:$0xff]
      %v229 = vld [vmem:[%s220 + $0x8] sm:$0xff]
      %v230 = vld [vmem:[%s220 + $0x10] sm:$0xff]
      %v231 = vld [vmem:[%s220 + $0x18] sm:$0xff]
      %v232 = vld [vmem:[%s1] sm:$0xff]
      %v233 = vld [vmem:[%s1 + $0x8] sm:$0xff]
      %v234 = vld [vmem:[%s2] sm:$0x1]
      %v236 = vlaneseq
      %v237 = vshrl.u32 %v236, 7
      %v238 = vsub.s32 0, %v237
      %v239 = vrot.slane %v234, %v238
      %vm241 = vcmask 130048
      %v243 = vsel %vm241, %v228, 0
      %v246 = vsel %vm241, %v229, 0
      %v249 = vsel %vm241, %v230, 0
      %v252 = vsel %vm241, %v231, 0
      %254 = vmatprep.subr.mxu0 0.0
      %255 = vmatpush1.msra.mxu0 %v232
      %256 = vmatprep.subr.mxu0 0.0
      %257 = vmatpush1.msra.mxu0 %v233
      %258 = vmatprep.subr.mxu0 0.0
      %259 = vmatpush1.msra.mxu0 0.0
      %260 = vmatprep.subr.mxu0 0.0
      %261 = vmatpush1.msra.mxu0 0.0
      %262 = vmatprep.subr.mxu0 0.0
      %263 = vmatpush1.msra.mxu0 0.0
      %264 = vmatprep.subr.mxu0 0.0
      %265 = vmatpush1.msra.mxu0 0.0
      %266 = vmatprep.subr.mxu0 0.0
      %267 = vmatpush1.msra.mxu0 0.0
      %268 = vmatprep.subr.mxu0 0.0
      %269 = vmatpush1.msra.mxu0 0.0
      %270 = vmatprep.subr.mxu0 0.0
      %271 = vmatpush1.msra.mxu0 0.0
      %272 = vmatprep.subr.mxu0 0.0
      %273 = vmatpush1.msra.mxu0 0.0
      %274 = vmatprep.subr.mxu0 0.0
      %275 = vmatpush1.msra.mxu0 0.0
      %276 = vmatprep.subr.mxu0 0.0
      %277 = vmatpush1.msra.mxu0 0.0
      %278 = vmatprep.subr.mxu0 0.0
      %279 = vmatpush1.msra.mxu0 0.0
      %280 = vmatprep.subr.mxu0 0.0
      %281 = vmatpush1.msra.mxu0 0.0
      %282 = vmatprep.subr.mxu0 0.0
      %283 = vmatpush1.msra.mxu0 0.0
      %284 = vmatprep.subr.mxu0 0.0
      %285 = vmatpush1.msra.mxu0 0.0
      %286 = vmatprep.subr.mxu0 0.0
      %287 = vmatpush1.msra.mxu0 0.0
      %288 = vmatprep.subr.mxu0 0.0
      %289 = vmatpush1.msra.mxu0 0.0
      %290 = vmatprep.subr.mxu0 0.0
      %291 = vmatpush1.msra.mxu0 0.0
      %292 = vmatprep.subr.mxu0 0.0
      %293 = vmatpush1.msra.mxu0 0.0
      %294 = vmatprep.subr.mxu0 0.0
      %295 = vmatpush1.msra.mxu0 0.0
      %296 = vmatprep.subr.mxu0 0.0
      %297 = vmatpush1.msra.mxu0 0.0
      %298 = vmatprep.subr.mxu0 0.0
      %299 = vmatpush1.msra.mxu0 0.0
      %300 = vmatprep.subr.mxu0 0.0
      %301 = vmatpush1.msra.mxu0 0.0
      %302 = vmatprep.subr.mxu0 0.0
      %303 = vmatpush1.msra.mxu0 0.0
      %304 = vmatprep.subr.mxu0 0.0
      %305 = vmatpush1.msra.mxu0 0.0
      %306 = vmatprep.subr.mxu0 0.0
      %307 = vmatpush1.msra.mxu0 0.0
      %308 = vmatprep.subr.mxu0 0.0
      %309 = vmatpush1.msra.mxu0 0.0
      %310 = vmatprep.subr.mxu0 0.0
      %311 = vmatpush1.msra.mxu0 0.0
      %312 = vmatprep.subr.mxu0 0.0
      %313 = vmatpush1.msra.mxu0 0.0
      %314 = vmatprep.subr.mxu0 0.0
      %315 = vmatpush1.msra.mxu0 0.0
      %316 = vmatprep.subr.mxu0 0.0
      %317 = vmatpush1.msra.mxu0 0.0
      %318 = vmatprep.mubr.f32.mxu0 0.0
      %319 = vmatmul.mubr.f32.gmra.mrb[0].mxu0 %v243
      %v320 = vpop.f32.mrb[0].mxu0
      %v321 = vadd.f32 %v239, %v320
      %v322 = vpop.f32.mrb[0].mxu0
      %323 = vmatprep.mubr.f32.mxu0 0.0
      %324 = vmatmul.mubr.f32.gmra.mrb[0].mxu0 %v246
      %v325 = vpop.f32.mrb[0].mxu0
      %v326 = vadd.f32 %v239, %v325
      %v327 = vpop.f32.mrb[0].mxu0
      %328 = vmatprep.mubr.f32.mxu0 0.0
      %329 = vmatmul.mubr.f32.gmra.mrb[0].mxu0 %v249
      %v330 = vpop.f32.mrb[0].mxu0
      %v331 = vadd.f32 %v239, %v330
      %v332 = vpop.f32.mrb[0].mxu0
      %333 = vmatprep.mubr.f32.mxu0 0.0
      %334 = vmatmul.mubr.f32.gmra.mrb[0].mxu0 %v252
      %v335 = vpop.f32.mrb[0].mxu0
      %v336 = vadd.f32 %v239, %v335
      %v337 = vpop.f32.mrb[0].mxu0
      %338 = vdwg.mxu0
      %v339 = vtanh.pop %v321
      %v340 = vtanh.pop %v326
      %v341 = vtanh.pop %v331
      %v342 = vtanh.pop %v336
      %v343 = vld [vmem:[%s3] sm:$0xff]
      %v344 = vld [vmem:[%s3 + $0x8] sm:$0xff]
      %v345 = vld [vmem:[%s3 + $0x10] sm:$0xff]
      %v346 = vld [vmem:[%s3 + $0x18] sm:$0xff]
      %v347 = vld [vmem:[%s3 + $0x20] sm:$0xff]
      %v348 = vld [vmem:[%s3 + $0x28] sm:$0xff]
      %v349 = vld [vmem:[%s3 + $0x30] sm:$0xff]
      %v350 = vld [vmem:[%s3 + $0x38] sm:$0xff]
      %v351 = vld [vmem:[%s3 + $0x40] sm:$0xff]
      %v352 = vld [vmem:[%s3 + $0x48] sm:$0xff]
      %v353 = vld [vmem:[%s3 + $0x50] sm:$0xff]
      %v354 = vld [vmem:[%s3 + $0x58] sm:$0xff]
      %v355 = vld [vmem:[%s3 + $0x60] sm:$0xff]
      %v356 = vld [vmem:[%s3 + $0x68] sm:$0xff]
      %v357 = vld [vmem:[%s3 + $0x70] sm:$0xff]
      %v358 = vld [vmem:[%s3 + $0x78] sm:$0xff]
      %v359 = vld [vmem:[%s4] sm:$0x1]
      %v361 = vlaneseq
      %v362 = vshrl.u32 %v361, 7
      %v363 = vsub.s32 0, %v362
      %v364 = vrot.slane %v359, %v363
      %366 = vmatprep.subr.mxu0 0.0
      %367 = vmatpush1.msra.mxu0 %v343
      %368 = vmatprep.subr.mxu0 0.0
      %369 = vmatpush1.msra.mxu0 %v344
      %370 = vmatprep.subr.mxu0 0.0
      %371 = vmatpush1.msra.mxu0 %v345
      %372 = vmatprep.subr.mxu0 0.0
      %373 = vmatpush1.msra.mxu0 %v346
      %374 = vmatprep.subr.mxu0 0.0
      %375 = vmatpush1.msra.mxu0 %v347
      %376 = vmatprep.subr.mxu0 0.0
      %377 = vmatpush1.msra.mxu0 %v348
      %378 = vmatprep.subr.mxu0 0.0
      %379 = vmatpush1.msra.mxu0 %v349
      %380 = vmatprep.subr.mxu0 0.0
      %381 = vmatpush1.msra.mxu0 %v350
      %382 = vmatprep.subr.mxu0 0.0
      %383 = vmatpush1.msra.mxu0 %v351
      %384 = vmatprep.subr.mxu0 0.0
      %385 = vmatpush1.msra.mxu0 %v352
      %386 = vmatprep.subr.mxu0 0.0
      %387 = vmatpush1.msra.mxu0 %v353
      %388 = vmatprep.subr.mxu0 0.0
      %389 = vmatpush1.msra.mxu0 %v354
      %390 = vmatprep.subr.mxu0 0.0
      %391 = vmatpush1.msra.mxu0 %v355
      %392 = vmatprep.subr.mxu0 0.0
      %393 = vmatpush1.msra.mxu0 %v356
      %394 = vmatprep.subr.mxu0 0.0
      %395 = vmatpush1.msra.mxu0 %v357
      %396 = vmatprep.subr.mxu0 0.0
      %397 = vmatpush1.msra.mxu0 %v358
      %398 = vmatprep.subr.mxu0 0.0
      %399 = vmatpush1.msra.mxu0 0.0
      %400 = vmatprep.subr.mxu0 0.0
      %401 = vmatpush1.msra.mxu0 0.0
      %402 = vmatprep.subr.mxu0 0.0
      %403 = vmatpush1.msra.mxu0 0.0
      %404 = vmatprep.subr.mxu0 0.0
      %405 = vmatpush1.msra.mxu0 0.0
      %406 = vmatprep.subr.mxu0 0.0
      %407 = vmatpush1.msra.mxu0 0.0
      %408 = vmatprep.subr.mxu0 0.0
      %409 = vmatpush1.msra.mxu0 0.0
      %410 = vmatprep.subr.mxu0 0.0
      %411 = vmatpush1.msra.mxu0 0.0
      %412 = vmatprep.subr.mxu0 0.0
      %413 = vmatpush1.msra.mxu0 0.0
      %414 = vmatprep.subr.mxu0 0.0
      %415 = vmatpush1.msra.mxu0 0.0
      %416 = vmatprep.subr.mxu0 0.0
      %417 = vmatpush1.msra.mxu0 0.0
      %418 = vmatprep.subr.mxu0 0.0
      %419 = vmatpush1.msra.mxu0 0.0
      %420 = vmatprep.subr.mxu0 0.0
      %421 = vmatpush1.msra.mxu0 0.0
      %422 = vmatprep.subr.mxu0 0.0
      %423 = vmatpush1.msra.mxu0 0.0
      %424 = vmatprep.subr.mxu0 0.0
      %425 = vmatpush1.msra.mxu0 0.0
      %426 = vmatprep.subr.mxu0 0.0
      %427 = vmatpush1.msra.mxu0 0.0
      %428 = vmatprep.subr.mxu0 0.0
      %429 = vmatpush1.msra.mxu0 0.0
      %430 = vmatprep.mubr.f32.mxu0 0.0
      %431 = vmatmul.mubr.f32.gmra.mrb[0].mxu0 %v339
      %v432 = vpop.f32.mrb[0].mxu0
      %v433 = vadd.f32 %v364, %v432
      %v434 = vpop.f32.mrb[0].mxu0
      %435 = vmatprep.mubr.f32.mxu0 0.0
      %436 = vmatmul.mubr.f32.gmra.mrb[0].mxu0 %v340
      %v437 = vpop.f32.mrb[0].mxu0
      %v438 = vadd.f32 %v364, %v437
      %v439 = vpop.f32.mrb[0].mxu0
      %440 = vmatprep.mubr.f32.mxu0 0.0
      %441 = vmatmul.mubr.f32.gmra.mrb[0].mxu0 %v341
      %v442 = vpop.f32.mrb[0].mxu0
      %v443 = vadd.f32 %v364, %v442
      %v444 = vpop.f32.mrb[0].mxu0
      %445 = vmatprep.mubr.f32.mxu0 0.0
      %446 = vmatmul.mubr.f32.gmra.mrb[0].mxu0 %v342
      %v447 = vpop.f32.mrb[0].mxu0
      %v448 = vadd.f32 %v364, %v447
      %v449 = vpop.f32.mrb[0].mxu0
      %450 = vdwg.mxu0
      %vm451 = vcmask 261120
      %452 = vst.msk [vmem:[%s226] sm:$0xff] %vm451, %v433
      %453 = vst.msk [vmem:[%s226 + $0x8] sm:$0xff] %vm451, %v438
      %454 = vst.msk [vmem:[%s226 + $0x10] sm:$0xff] %vm451, %v443
      %455 = vst.msk [vmem:[%s226 + $0x18] sm:$0xff] %vm451, %v448
      %s456 = smul.u32 4, %s16
      %p457 = scmp.lt.s32.totalorder %s456, 7
      %s458 = scalar_select %p457, %s456, 7
      %s459 = smul.addr %s458, 8
      %s460 = scalar_lea.vmem %s5, %s459
      // Predicated region
      $region41: #{tpu_custom_call.1} parent=39 // pred_check
        %p461 = pneg %p144
      $region42: #{tpu_custom_call.1} parent=39 // pred_check_branch
        %463 = sbr.rel (%p461) target = $region44
      $region43: #{tpu_custom_call.1} parent=39 // pred_region
        %s464 = smul.u32 4, %s16
      $region44: #{tpu_custom_call.1} parent=39 // pred_fallthru
        _
    $region40: #{tpu_custom_call.1} parent=5 // pred_fallthru
      _
    %p465 = scmp.le.s32.totalorder 2, %s11
    // Predicated region
    $region45: #{tpu_custom_call.1} parent=5 // pred_check
      %p466 = pneg %p465
    $region46: #{tpu_custom_call.1} parent=5 // pred_check_branch
      %468 = sbr.rel (%p466) target = $region48
    $region47: #{tpu_custom_call.1} parent=5 // pred_region
      %s469 = ssub.s32 %s11, 2
      // Predicated region
      $region49: #{tpu_custom_call.1} parent=47 // pred_check
        %p470 = pneg %p150
      $region50: #{tpu_custom_call.1} parent=47 // pred_check_branch
        %472 = sbr.rel (%p470) target = $region52
      $region51: #{tpu_custom_call.1} parent=47 // pred_region
        %s473 = smul.u32 4, %s17
        %p474 = scmp.lt.s32.totalorder %s473, 7
        %s475 = scalar_select %p474, %s473, 7
        %s476 = smul.addr %s475, 8
        %s477 = scalar_lea.vmem %s5, %s476
      $region52: #{tpu_custom_call.1} parent=47 // pred_fallthru
        _
    $region48: #{tpu_custom_call.1} parent=5 // pred_fallthru
      _
  $region6: #{tpu_custom_call.1} parent=0 // loop_footer
    %s15 = sadd.s32 1, %s11
  $region7: #{tpu_custom_call.1} parent=0 // loop_footer_branch
    %10 = sbr.rel target = $region3
  $region8: #{tpu_custom_call.1} parent=0 // loop_exit
    _

// kernel: tpu_custom_call.1
$region0: #{tpu_custom_call.1}
  #allocation0 [shape = 'u32[]', space=smem, size = 0x4, offset = 0x4, fixed_abs, tag = 'smem constant byte address 0x4 - core index']
  #allocation1 [shape = 'u32[144,128]{1,0:T(1,128)}', space=vmem, size = 0x12000, scoped, tag = 'internal scratch']
  %s0 = inlined_call_operand.vmem [shape: f32[64,16], index: 0, kind: input, shape index: {}]
  %s1 = inlined_call_operand.vmem [shape: f32[16,128], index: 1, kind: input, shape index: {}]
  %s2 = inlined_call_operand.vmem [shape: f32[1,128], index: 2, kind: input, shape index: {}]
  %s3 = inlined_call_operand.vmem [shape: f32[128,32], index: 3, kind: input, shape index: {}]
  %s4 = inlined_call_operand.vmem [shape: f32[1,32], index: 4, kind: input, shape index: {}]
  %s5 = inlined_call_operand.vmem [shape: f32[64,32], index: 5, kind: output, shape index: {}]
  %s6 = sld [smem:[#allocation0]]
  $region53: #{tpu_custom_call.1} parent=0
    _
  %s8 = ssub.s32 1, %s6
  %s9 = scalar_select 0, %s8, %s6
  loop: start=0, step=1, limit=4
  $region2: #{tpu_custom_call.1} parent=0 // loop_pre_header
    _
  $region3: #{tpu_custom_call.1} parent=0 // loop_header
    %s11 = sphi 0, %s15
    %p12 = scmp.ge.s32.totalorder %s11, 4
    %s21 = sphi 0, %s23
    %s24 = sphi 0, %s21
    %s25 = sphi 0, %s24
    %s41 = sphi 0, %s25
    %s45 = sphi 0, %s45
    %s47 = sphi 0, %s45
    %s48 = sphi 0, %s47
    %s62 = sphi 0, %s48
    %s66 = sphi 0, %s66
    %s68 = sphi 0, %s66
    %s69 = sphi 0, %s68
    %s83 = sphi 0, %s69
    %s87 = sphi 0, %s87
    %s89 = sphi 0, %s87
    %s90 = sphi 0, %s89
    %s104 = sphi 0, %s90
    %s108 = sphi 0, %s108
    %s110 = sphi 0, %s108
    %s111 = sphi 0, %s110
    %s125 = sphi 0, %s111
    %s131 = sphi 0, %s133
    %s134 = sphi 0, %s131
    %s135 = sphi 0, %s134
    %s151 = sphi 0, %s135
  $region4: #{tpu_custom_call.1} parent=0 // loop_header_branch
    %14 = sbr.rel (%p12) target = $region8
  $region5: #{tpu_custom_call.1} parent=0 // loop_body
    %s16 = ssub.s32 %s11, 1
    %s17 = ssub.s32 %s11, 2
    %s18 = sadd.s32 %s11, 1
    %s19 = ssub.s32 %s11, %s18
    %p20 = scmp.eq.s32.totalorder %s19, 0
    %s22 = sadd.s32 %s21, 1
    %s23 = scalar_select %p20, %s21, %s22
    %p26 = pneg %p20
    %p27 = scmp.eq.s32.totalorder %s11, 1
    %p28 = por %p26, %p27
    %p29 = scmp.ne.s32.totalorder %s21, %s24
    %p30 = scmp.eq.s32.totalorder %s11, 0
    %p31 = por %p29, %p30
    %p32 = scmp.ne.s32.totalorder %s21, %s24
    %p33 = scmp.eq.s32.totalorder %s16, 1
    %p34 = por %p32, %p33
    %p35 = scmp.ne.s32.totalorder %s24, %s25
    %p36 = scmp.eq.s32.totalorder %s16, 0
    %p37 = por %p35, %p36
    %p38 = scmp.ne.s32.totalorder %s24, %s25
    %p39 = scmp.eq.s32.totalorder %s17, 1
    %p40 = por %p38, %p39
    %p42 = scmp.ne.s32.totalorder %s25, %s41
    %p43 = scmp.eq.s32.totalorder %s17, 0
    %p44 = por %p42, %p43
    %s46 = sadd.s32 %s45, 1
    %p49 = scmp.eq.s32.totalorder %s11, 1
    %p50 = scmp.ne.s32.totalorder %s45, %s47
    %p51 = scmp.eq.s32.totalorder %s11, 0
    %p52 = por %p50, %p51
    %p53 = scmp.ne.s32.totalorder %s45, %s47
    %p54 = scmp.eq.s32.totalorder %s16, 1
    %p55 = por %p53, %p54
    %p56 = scmp.ne.s32.totalorder %s47, %s48
    %p57 = scmp.eq.s32.totalorder %s16, 0
    %p58 = por %p56, %p57
    %p59 = scmp.ne.s32.totalorder %s47, %s48
    %p60 = scmp.eq.s32.totalorder %s17, 1
    %p61 = por %p59, %p60
    %p63 = scmp.ne.s32.totalorder %s48, %s62
    %p64 = scmp.eq.s32.totalorder %s17, 0
    %p65 = por %p63, %p64
    %s67 = sadd.s32 %s66, 1
    %p70 = scmp.eq.s32.totalorder %s11, 1
    %p71 = scmp.ne.s32.totalorder %s66, %s68
    %p72 = scmp.eq.s32.totalorder %s11, 0
    %p73 = por %p71, %p72
    %p74 = scmp.ne.s32.totalorder %s66, %s68
    %p75 = scmp.eq.s32.totalorder %s16, 1
    %p76 = por %p74, %p75
    %p77 = scmp.ne.s32.totalorder %s68, %s69
    %p78 = scmp.eq.s32.totalorder %s16, 0
    %p79 = por %p77, %p78
    %p80 = scmp.ne.s32.totalorder %s68, %s69
    %p81 = scmp.eq.s32.totalorder %s17, 1
    %p82 = por %p80, %p81
    %p84 = scmp.ne.s32.totalorder %s69, %s83
    %p85 = scmp.eq.s32.totalorder %s17, 0
    %p86 = por %p84, %p85
    %s88 = sadd.s32 %s87, 1
    %p91 = scmp.eq.s32.totalorder %s11, 1
    %p92 = scmp.ne.s32.totalorder %s87, %s89
    %p93 = scmp.eq.s32.totalorder %s11, 0
    %p94 = por %p92, %p93
    %p95 = scmp.ne.s32.totalorder %s87, %s89
    %p96 = scmp.eq.s32.totalorder %s16, 1
    %p97 = por %p95, %p96
    %p98 = scmp.ne.s32.totalorder %s89, %s90
    %p99 = scmp.eq.s32.totalorder %s16, 0
    %p100 = por %p98, %p99
    %p101 = scmp.ne.s32.totalorder %s89, %s90
    %p102 = scmp.eq.s32.totalorder %s17, 1
    %p103 = por %p101, %p102
    %p105 = scmp.ne.s32.totalorder %s90, %s104
    %p106 = scmp.eq.s32.totalorder %s17, 0
    %p107 = por %p105, %p106
    %s109 = sadd.s32 %s108, 1
    %p112 = scmp.eq.s32.totalorder %s11, 1
    %p113 = scmp.ne.s32.totalorder %s108, %s110
    %p114 = scmp.eq.s32.totalorder %s11, 0
    %p115 = por %p113, %p114
    %p116 = scmp.ne.s32.totalorder %s108, %s110
    %p117 = scmp.eq.s32.totalorder %s16, 1
    %p118 = por %p116, %p117
    %p119 = scmp.ne.s32.totalorder %s110, %s111
    %p120 = scmp.eq.s32.totalorder %s16, 0
    %p121 = por %p119, %p120
    %p122 = scmp.ne.s32.totalorder %s110, %s111
    %p123 = scmp.eq.s32.totalorder %s17, 1
    %p124 = por %p122, %p123
    %p126 = scmp.ne.s32.totalorder %s111, %s125
    %p127 = scmp.eq.s32.totalorder %s17, 0
    %p128 = por %p126, %p127
    %s129 = ssub.s32 %s11, %s18
    %p130 = scmp.eq.s32.totalorder %s129, 0
    %s132 = sadd.s32 %s131, 1
    %s133 = scalar_select %p130, %s131, %s132
    %p136 = pneg %p130
    %p137 = scmp.eq.s32.totalorder %s11, 1
    %p138 = por %p136, %p137
    %p139 = scmp.ne.s32.totalorder %s131, %s134
    %p140 = scmp.eq.s32.totalorder %s11, 0
    %p141 = por %p139, %p140
    %p142 = scmp.ne.s32.totalorder %s131, %s134
    %p143 = scmp.eq.s32.totalorder %s16, 1
    %p144 = por %p142, %p143
    %p145 = scmp.ne.s32.totalorder %s134, %s135
    %p146 = scmp.eq.s32.totalorder %s16, 0
    %p147 = por %p145, %p146
    %p148 = scmp.ne.s32.totalorder %s134, %s135
    %p149 = scmp.eq.s32.totalorder %s17, 1
    %p150 = por %p148, %p149
    %p152 = scmp.ne.s32.totalorder %s135, %s151
    %p153 = scmp.eq.s32.totalorder %s17, 0
    %p154 = por %p152, %p153
    %p155 = scmp.le.s32.totalorder 1, %s11
    %p156 = scmp.lt.s32.totalorder %s11, 3
    %p157 = pnand %p155, %p156
    %p158 = pneg %p157
    // Predicated region
    $region9: #{tpu_custom_call.1} parent=5 // pred_check
      _
    $region10: #{tpu_custom_call.1} parent=5 // pred_check_branch
      %160 = sbr.rel (%p157) target = $region12
    $region11: #{tpu_custom_call.1} parent=5 // pred_region
      %s161 = ssub.s32 %s11, 1
      // Predicated region
      $region13: #{tpu_custom_call.1} parent=11 // pred_check
        %p162 = pneg %p58
      $region14: #{tpu_custom_call.1} parent=11 // pred_check_branch
        %164 = sbr.rel (%p162) target = $region16
      $region15: #{tpu_custom_call.1} parent=11 // pred_region
        _
      $region16: #{tpu_custom_call.1} parent=11 // pred_fallthru
        _
      // Predicated region
      $region17: #{tpu_custom_call.1} parent=11 // pred_check
        %p165 = pneg %p79
      $region18: #{tpu_custom_call.1} parent=11 // pred_check_branch
        %167 = sbr.rel (%p165) target = $region20
      $region19: #{tpu_custom_call.1} parent=11 // pred_region
        _
      $region20: #{tpu_custom_call.1} parent=11 // pred_fallthru
        _
      // Predicated region
      $region21: #{tpu_custom_call.1} parent=11 // pred_check
        %p168 = pneg %p100
      $region22: #{tpu_custom_call.1} parent=11 // pred_check_branch
        %170 = sbr.rel (%p168) target = $region24
      $region23: #{tpu_custom_call.1} parent=11 // pred_region
        _
      $region24: #{tpu_custom_call.1} parent=11 // pred_fallthru
        _
      // Predicated region
      $region25: #{tpu_custom_call.1} parent=11 // pred_check
        %p171 = pneg %p121
      $region26: #{tpu_custom_call.1} parent=11 // pred_check_branch
        %173 = sbr.rel (%p171) target = $region28
      $region27: #{tpu_custom_call.1} parent=11 // pred_region
        _
      $region28: #{tpu_custom_call.1} parent=11 // pred_fallthru
        _
    $region12: #{tpu_custom_call.1} parent=5 // pred_fallthru
      _
    %p174 = scmp.lt.s32.totalorder %s11, 2
    // Predicated region
    $region29: #{tpu_custom_call.1} parent=5 // pred_check
      %p175 = pneg %p174
    $region30: #{tpu_custom_call.1} parent=5 // pred_check_branch
      %177 = sbr.rel (%p175) target = $region32
    $region31: #{tpu_custom_call.1} parent=5 // pred_region
      // Predicated region
      $region33: #{tpu_custom_call.1} parent=31 // pred_check
        %p178 = pneg %p31
      $region34: #{tpu_custom_call.1} parent=31 // pred_check_branch
        %180 = sbr.rel (%p178) target = $region36
      $region35: #{tpu_custom_call.1} parent=31 // pred_region
        %s181 = smul.u32 4, %s11
        %p182 = scmp.lt.s32.totalorder %s181, 7
        %s183 = scalar_select %p182, %s181, 7
        %s184 = smul.addr %s183, 8
        %s185 = scalar_lea.vmem %s0, %s184
        %s186 = smul.u32 4, %s11
      $region36: #{tpu_custom_call.1} parent=31 // pred_fallthru
        _
    $region32: #{tpu_custom_call.1} parent=5 // pred_fallthru
      _
    %p187 = scmp.le.s32.totalorder 1, %s11
    %p188 = scmp.lt.s32.totalorder %s11, 3
    %p189 = pnand %p187, %p188
    %p190 = pneg %p189
    // Predicated region
    $region37: #{tpu_custom_call.1} parent=5 // pred_check
      _
    $region38: #{tpu_custom_call.1} parent=5 // pred_check_branch
      %192 = sbr.rel (%p189) target = $region40
    $region39: #{tpu_custom_call.1} parent=5 // pred_region
      %s193 = ssub.s32 %s11, 1
      %s194 = smul.u32 4, %s16
      %p195 = scmp.lt.s32.totalorder %s194, 7
      %s196 = scalar_select %p195, %s194, 7
      %s197 = smul.addr %s196, 8
      %s198 = scalar_lea.vmem %s0, %s197
      %p199 = pneg %p37
      %p200 = pneg %p34
      %p201 = pneg %p58
      %p202 = pneg %p55
      %p203 = pneg %p79
      %p204 = pneg %p76
      %p205 = pneg %p100
      %p206 = pneg %p97
      %p207 = pneg %p121
      %p208 = pneg %p118
      %p209 = pneg %p147
      %p210 = pneg %p144
      %s211 = smul.u32 4, %s16
      %p212 = scmp.lt.s32.totalorder %s211, 7
      %s213 = scalar_select %p212, %s211, 7
      %s214 = smul.addr %s213, 8
      %s215 = scalar_lea.vmem %s5, %s214
      %s216 = smul.u32 4, %s16
      %p217 = scmp.lt.s32.totalorder %s216, 7
      %s218 = scalar_select %p217, %s216, 7
      %s219 = smul.addr %s218, 8
      %s220 = scalar_lea.vmem %s0, %s219
      %s221 = smul.u32 4, %s16
      %s222 = smul.u32 4, %s16
      %p223 = scmp.lt.s32.totalorder %s222, 7
      %s224 = scalar_select %p223, %s222, 7
      %s225 = smul.addr %s224, 8
      %s226 = scalar_lea.vmem %s5, %s225
      %s227 = smul.u32 4, %s16
      %v228 = vld [vmem:[%s220] sm:$0xff]
      %v229 = vld [vmem:[%s220 + $0x8] sm:$0xff]
      %v230 = vld [vmem:[%s220 + $0x10] sm:$0xff]
      %v231 = vld [vmem:[%s220 + $0x18] sm:$0xff]
      %v232 = vld [vmem:[%s1] sm:$0xff]
      %v233 = vld [vmem:[%s1 + $0x8] sm:$0xff]
      %v234 = vld [vmem:[%s2] sm:$0x1]
      %v236 = vlaneseq
      %v237 = vshrl.u32 %v236, 7
      %v238 = vsub.s32 0, %v237
      %v239 = vrot.slane %v234, %v238
      %vm241 = vcmask 130048
      %v243 = vsel %vm241, %v228, 0
      %v246 = vsel %vm241, %v229, 0
      %v249 = vsel %vm241, %v230, 0
      %v252 = vsel %vm241, %v231, 0
      %254 = vmatprep.subr.mxu0 0.0
      %255 = vmatpush1.msra.mxu0 %v232
      %256 = vmatprep.subr.mxu0 0.0
      %257 = vmatpush1.msra.mxu0 %v233
      %258 = vmatprep.subr.mxu0 0.0
      %259 = vmatpush1.msra.mxu0 0.0
      %260 = vmatprep.subr.mxu0 0.0
      %261 = vmatpush1.msra.mxu0 0.0
      %262 = vmatprep.subr.mxu0 0.0
      %263 = vmatpush1.msra.mxu0 0.0
      %264 = vmatprep.subr.mxu0 0.0
      %265 = vmatpush1.msra.mxu0 0.0
      %266 = vmatprep.subr.mxu0 0.0
      %267 = vmatpush1.msra.mxu0 0.0
      %268 = vmatprep.subr.mxu0 0.0
      %269 = vmatpush1.msra.mxu0 0.0
      %270 = vmatprep.subr.mxu0 0.0
      %271 = vmatpush1.msra.mxu0 0.0
      %272 = vmatprep.subr.mxu0 0.0
      %273 = vmatpush1.msra.mxu0 0.0
      %274 = vmatprep.subr.mxu0 0.0
      %275 = vmatpush1.msra.mxu0 0.0
      %276 = vmatprep.subr.mxu0 0.0
      %277 = vmatpush1.msra.mxu0 0.0
      %278 = vmatprep.subr.mxu0 0.0
      %279 = vmatpush1.msra.mxu0 0.0
      %280 = vmatprep.subr.mxu0 0.0
      %281 = vmatpush1.msra.mxu0 0.0
      %282 = vmatprep.subr.mxu0 0.0
      %283 = vmatpush1.msra.mxu0 0.0
      %284 = vmatprep.subr.mxu0 0.0
      %285 = vmatpush1.msra.mxu0 0.0
      %286 = vmatprep.subr.mxu0 0.0
      %287 = vmatpush1.msra.mxu0 0.0
      %288 = vmatprep.subr.mxu0 0.0
      %289 = vmatpush1.msra.mxu0 0.0
      %290 = vmatprep.subr.mxu0 0.0
      %291 = vmatpush1.msra.mxu0 0.0
      %292 = vmatprep.subr.mxu0 0.0
      %293 = vmatpush1.msra.mxu0 0.0
      %294 = vmatprep.subr.mxu0 0.0
      %295 = vmatpush1.msra.mxu0 0.0
      %296 = vmatprep.subr.mxu0 0.0
      %297 = vmatpush1.msra.mxu0 0.0
      %298 = vmatprep.subr.mxu0 0.0
      %299 = vmatpush1.msra.mxu0 0.0
      %300 = vmatprep.subr.mxu0 0.0
      %301 = vmatpush1.msra.mxu0 0.0
      %302 = vmatprep.subr.mxu0 0.0
      %303 = vmatpush1.msra.mxu0 0.0
      %304 = vmatprep.subr.mxu0 0.0
      %305 = vmatpush1.msra.mxu0 0.0
      %306 = vmatprep.subr.mxu0 0.0
      %307 = vmatpush1.msra.mxu0 0.0
      %308 = vmatprep.subr.mxu0 0.0
      %309 = vmatpush1.msra.mxu0 0.0
      %310 = vmatprep.subr.mxu0 0.0
      %311 = vmatpush1.msra.mxu0 0.0
      %312 = vmatprep.subr.mxu0 0.0
      %313 = vmatpush1.msra.mxu0 0.0
      %314 = vmatprep.subr.mxu0 0.0
      %315 = vmatpush1.msra.mxu0 0.0
      %316 = vmatprep.subr.mxu0 0.0
      %317 = vmatpush1.msra.mxu0 0.0
      %318 = vmatprep.mubr.f32.mxu0 0.0
      %319 = vmatmul.mubr.f32.gmra.mrb[0].mxu0 %v243
      %v320 = vpop.f32.mrb[0].mxu0
      %v321 = vadd.f32 %v239, %v320
      %v322 = vpop.f32.mrb[0].mxu0
      %323 = vmatprep.mubr.f32.mxu0 0.0
      %324 = vmatmul.mubr.f32.gmra.mrb[0].mxu0 %v246
      %v325 = vpop.f32.mrb[0].mxu0
      %v326 = vadd.f32 %v239, %v325
      %v327 = vpop.f32.mrb[0].mxu0
      %328 = vmatprep.mubr.f32.mxu0 0.0
      %329 = vmatmul.mubr.f32.gmra.mrb[0].mxu0 %v249
      %v330 = vpop.f32.mrb[0].mxu0
      %v331 = vadd.f32 %v239, %v330
      %v332 = vpop.f32.mrb[0].mxu0
      %333 = vmatprep.mubr.f32.mxu0 0.0
      %334 = vmatmul.mubr.f32.gmra.mrb[0].mxu0 %v252
      %v335 = vpop.f32.mrb[0].mxu0
      %v336 = vadd.f32 %v239, %v335
      %v337 = vpop.f32.mrb[0].mxu0
      %338 = vdwg.mxu0
      %v339 = vtanh.pop %v321
      %v340 = vtanh.pop %v326
      %v341 = vtanh.pop %v331
      %v342 = vtanh.pop %v336
      %v343 = vld [vmem:[%s3] sm:$0xff]
      %v344 = vld [vmem:[%s3 + $0x8] sm:$0xff]
      %v345 = vld [vmem:[%s3 + $0x10] sm:$0xff]
      %v346 = vld [vmem:[%s3 + $0x18] sm:$0xff]
      %v347 = vld [vmem:[%s3 + $0x20] sm:$0xff]
      %v348 = vld [vmem:[%s3 + $0x28] sm:$0xff]
      %v349 = vld [vmem:[%s3 + $0x30] sm:$0xff]
      %v350 = vld [vmem:[%s3 + $0x38] sm:$0xff]
      %v351 = vld [vmem:[%s3 + $0x40] sm:$0xff]
      %v352 = vld [vmem:[%s3 + $0x48] sm:$0xff]
      %v353 = vld [vmem:[%s3 + $0x50] sm:$0xff]
      %v354 = vld [vmem:[%s3 + $0x58] sm:$0xff]
      %v355 = vld [vmem:[%s3 + $0x60] sm:$0xff]
      %v356 = vld [vmem:[%s3 + $0x68] sm:$0xff]
      %v357 = vld [vmem:[%s3 + $0x70] sm:$0xff]
      %v358 = vld [vmem:[%s3 + $0x78] sm:$0xff]
      %v359 = vld [vmem:[%s4] sm:$0x1]
      %v361 = vlaneseq
      %v362 = vshrl.u32 %v361, 7
      %v363 = vsub.s32 0, %v362
      %v364 = vrot.slane %v359, %v363
      %366 = vmatprep.subr.mxu0 0.0
      %367 = vmatpush1.msra.mxu0 %v343
      %368 = vmatprep.subr.mxu0 0.0
      %369 = vmatpush1.msra.mxu0 %v344
      %370 = vmatprep.subr.mxu0 0.0
      %371 = vmatpush1.msra.mxu0 %v345
      %372 = vmatprep.subr.mxu0 0.0
      %373 = vmatpush1.msra.mxu0 %v346
      %374 = vmatprep.subr.mxu0 0.0
      %375 = vmatpush1.msra.mxu0 %v347
      %376 = vmatprep.subr.mxu0 0.0
      %377 = vmatpush1.msra.mxu0 %v348
      %378 = vmatprep.subr.mxu0 0.0
      %379 = vmatpush1.msra.mxu0 %v349
      %380 = vmatprep.subr.mxu0 0.0
      %381 = vmatpush1.msra.mxu0 %v350
      %382 = vmatprep.subr.mxu0 0.0
      %383 = vmatpush1.msra.mxu0 %v351
      %384 = vmatprep.subr.mxu0 0.0
      %385 = vmatpush1.msra.mxu0 %v352
      %386 = vmatprep.subr.mxu0 0.0
      %387 = vmatpush1.msra.mxu0 %v353
      %388 = vmatprep.subr.mxu0 0.0
      %389 = vmatpush1.msra.mxu0 %v354
      %390 = vmatprep.subr.mxu0 0.0
      %391 = vmatpush1.msra.mxu0 %v355
      %392 = vmatprep.subr.mxu0 0.0
      %393 = vmatpush1.msra.mxu0 %v356
      %394 = vmatprep.subr.mxu0 0.0
      %395 = vmatpush1.msra.mxu0 %v357
      %396 = vmatprep.subr.mxu0 0.0
      %397 = vmatpush1.msra.mxu0 %v358
      %398 = vmatprep.subr.mxu0 0.0
      %399 = vmatpush1.msra.mxu0 0.0
      %400 = vmatprep.subr.mxu0 0.0
      %401 = vmatpush1.msra.mxu0 0.0
      %402 = vmatprep.subr.mxu0 0.0
      %403 = vmatpush1.msra.mxu0 0.0
      %404 = vmatprep.subr.mxu0 0.0
      %405 = vmatpush1.msra.mxu0 0.0
      %406 = vmatprep.subr.mxu0 0.0
      %407 = vmatpush1.msra.mxu0 0.0
      %408 = vmatprep.subr.mxu0 0.0
      %409 = vmatpush1.msra.mxu0 0.0
      %410 = vmatprep.subr.mxu0 0.0
      %411 = vmatpush1.msra.mxu0 0.0
      %412 = vmatprep.subr.mxu0 0.0
      %413 = vmatpush1.msra.mxu0 0.0
      %414 = vmatprep.subr.mxu0 0.0
      %415 = vmatpush1.msra.mxu0 0.0
      %416 = vmatprep.subr.mxu0 0.0
      %417 = vmatpush1.msra.mxu0 0.0
      %418 = vmatprep.subr.mxu0 0.0
      %419 = vmatpush1.msra.mxu0 0.0
      %420 = vmatprep.subr.mxu0 0.0
      %421 = vmatpush1.msra.mxu0 0.0
      %422 = vmatprep.subr.mxu0 0.0
      %423 = vmatpush1.msra.mxu0 0.0
      %424 = vmatprep.subr.mxu0 0.0
      %425 = vmatpush1.msra.mxu0 0.0
      %426 = vmatprep.subr.mxu0 0.0
      %427 = vmatpush1.msra.mxu0 0.0
      %428 = vmatprep.subr.mxu0 0.0
      %429 = vmatpush1.msra.mxu0 0.0
      %430 = vmatprep.mubr.f32.mxu0 0.0
      %431 = vmatmul.mubr.f32.gmra.mrb[0].mxu0 %v339
      %v432 = vpop.f32.mrb[0].mxu0
      %v433 = vadd.f32 %v364, %v432
      %v434 = vpop.f32.mrb[0].mxu0
      %435 = vmatprep.mubr.f32.mxu0 0.0
      %436 = vmatmul.mubr.f32.gmra.mrb[0].mxu0 %v340
      %v437 = vpop.f32.mrb[0].mxu0
      %v438 = vadd.f32 %v364, %v437
      %v439 = vpop.f32.mrb[0].mxu0
      %440 = vmatprep.mubr.f32.mxu0 0.0
      %441 = vmatmul.mubr.f32.gmra.mrb[0].mxu0 %v341
      %v442 = vpop.f32.mrb[0].mxu0
      %v443 = vadd.f32 %v364, %v442
      %v444 = vpop.f32.mrb[0].mxu0
      %445 = vmatprep.mubr.f32.mxu0 0.0
      %446 = vmatmul.mubr.f32.gmra.mrb[0].mxu0 %v342
      %v447 = vpop.f32.mrb[0].mxu0
      %v448 = vadd.f32 %v364, %v447
      %v449 = vpop.f32.mrb[0].mxu0
      %450 = vdwg.mxu0
      %vm451 = vcmask 261120
      %452 = vst.msk [vmem:[%s226] sm:$0xff] %vm451, %v433
      %453 = vst.msk [vmem:[%s226 + $0x8] sm:$0xff] %vm451, %v438
      %454 = vst.msk [vmem:[%s226 + $0x10] sm:$0xff] %vm451, %v443
      %455 = vst.msk [vmem:[%s226 + $0x18] sm:$0xff] %vm451, %v448
      %s456 = smul.u32 4, %s16
      %p457 = scmp.lt.s32.totalorder %s456, 7
      %s458 = scalar_select %p457, %s456, 7
      %s459 = smul.addr %s458, 8
      %s460 = scalar_lea.vmem %s5, %s459
      // Predicated region
      $region41: #{tpu_custom_call.1} parent=39 // pred_check
        %p461 = pneg %p144
      $region42: #{tpu_custom_call.1} parent=39 // pred_check_branch
        %463 = sbr.rel (%p461) target = $region44
      $region43: #{tpu_custom_call.1} parent=39 // pred_region
        %s464 = smul.u32 4, %s16
      $region44: #{tpu_custom_call.1} parent=39 // pred_fallthru
        _
    $region40: #{tpu_custom_call.1} parent=5 // pred_fallthru
      _
    %p465 = scmp.le.s32.totalorder 2, %s11
    // Predicated region
    $region45: #{tpu_custom_call.1} parent=5 // pred_check
      %p466 = pneg %p465
    $region46: #{tpu_custom_call.1} parent=5 // pred_check_branch
      %468 = sbr.rel (%p466) target = $region48
    $region47: #{tpu_custom_call.1} parent=5 // pred_region
      %s469 = ssub.s32 %s11, 2
      // Predicated region
      $region49: #{tpu_custom_call.1} parent=47 // pred_check
        %p470 = pneg %p150
      $region50: #{tpu_custom_call.1} parent=47 // pred_check_branch
        %472 = sbr.rel (%p470) target = $region52
      $region51: #{tpu_custom_call.1} parent=47 // pred_region
        %s473 = smul.u32 4, %s17
        %p474 = scmp.lt.s32.totalorder %s473, 7
        %s475 = scalar_select %p474, %s473, 7
        %s476 = smul.addr %s475, 8
        %s477 = scalar_lea.vmem %s5, %s476
      $region52: #{tpu_custom_call.1} parent=47 // pred_fallthru
        _
    $region48: #{tpu_custom_call.1} parent=5 // pred_fallthru
      _
  $region6: #{tpu_custom_call.1} parent=0 // loop_footer
    %s15 = sadd.s32 1, %s11
  $region7: #{tpu_custom_call.1} parent=0 // loop_footer_branch
    %10 = sbr.rel target = $region3
  $region8: #{tpu_custom_call.1} parent=0 // loop_exit
    _

</llo_original>
